<compile_context>
chip_gen: v7x
topology: tpu7x:2x2x1
jax: 0.10.0
libtpu: 0.0.40
codegen_flags: <defaults>
</compile_context>

<pallas_src>
import functools

import jax
import jax.numpy as jnp
from jax.experimental import pallas as pl
from jax.experimental.pallas import tpu as pltpu

HID = 256   # fc hidden width fixed by the module
LANE = 128


def _round_up(x, m):
    return (x + m - 1) // m * m


def _head_finalize(pooled, w1_ref, b1_ref, w2_ref, b2_ref, out_ref):
    # Linear(num_features, 256) with eval-mode BatchNorm1d folded into w1/b1.
    h = jnp.dot(pooled, w1_ref[...], preferred_element_type=jnp.float32) + b1_ref[...]
    h = jnp.maximum(h, 0.0)  # ReLU; Dropout(p=0.5) is identity in eval mode
    # Linear(256, num_classes), lane-padded to nc_pad columns (unmasked stores).
    out = jnp.dot(h, w2_ref[...], preferred_element_type=jnp.float32) + b2_ref[...]
    out_ref[...] = out.astype(out_ref.dtype)


def _ibc_single_kernel(x_ref, w1_ref, b1_ref, w2_ref, b2_ref, out_ref, *, inv_s):
    # Whole (B, C, S) feature map resident in VMEM: pool + head in one shot.
    x = x_ref[...].astype(jnp.float32)
    pooled = jnp.sum(x, axis=-1) * inv_s      # AdaptiveAvgPool3d(1) + view(B, -1)
    _head_finalize(pooled, w1_ref, b1_ref, w2_ref, b2_ref, out_ref)


def _ibc_stream_kernel(x_ref, w1_ref, b1_ref, w2_ref, b2_ref, out_ref, acc_ref,
                       *, inv_s, s_total, ts):
    s = pl.program_id(0)

    @pl.when(s == 0)
    def _():
        acc_ref[...] = jnp.zeros_like(acc_ref)

    # (B, C, ts) tile, spatial positions dense on lanes. Cast to f32 at load so the
    # accumulation runs on the native f32 VPU path and never drifts for large S.
    x = x_ref[...].astype(jnp.float32)
    # Mask the ragged last tile (lanes past S hold out-of-bounds garbage).
    lane = jax.lax.broadcasted_iota(jnp.int32, x.shape, dimension=2)
    x = jnp.where(lane < (s_total - s * ts), x, 0.0)
    acc_ref[...] += x                          # pure VPU add; no per-tile reduce

    @pl.when(s == pl.num_programs(0) - 1)
    def _():
        pooled = jnp.sum(acc_ref[...], axis=-1) * inv_s   # single cross-lane reduce
        _head_finalize(pooled, w1_ref, b1_ref, w2_ref, b2_ref, out_ref)


def ibc_forward(feat_ncdhw, params, *, ts=None):
    """feat_ncdhw: (B, C, D, H, W) backbone feature map (NCDHW, PyTorch convention)."""
    B, C, D, H, W = feat_ncdhw.shape
    S = D * H * W

    # (B, C, S) is a free reshape of contiguous NCDHW -- no host-side relayout/copy.
    x = feat_ncdhw.reshape(B, C, S)

    w1, b1, gamma, beta, rm, rv, w2, b2 = params
    num_classes = w2.shape[1]

    # Fold eval-mode BatchNorm1d into the first Linear (exact affine composition):
    #   w1' = w1 * (gamma * rsqrt(rv + eps));  b1' = (b1 - rm) * scale + beta
    eps = jnp.float32(1e-5)
    scale = gamma.astype(jnp.float32) * jax.lax.rsqrt(rv.astype(jnp.float32) + eps)
    w1f = w1.astype(jnp.float32) * scale.reshape(1, HID)
    b1f = ((b1.astype(jnp.float32).reshape(1, HID) - rm.astype(jnp.float32).reshape(1, HID))
           * scale.reshape(1, HID) + beta.astype(jnp.float32).reshape(1, HID))

    # Zero-pad classifier output to a lane-dense width (unmasked stores).
    nc_pad = _round_up(max(num_classes, LANE), LANE)
    w2p = jnp.zeros((HID, nc_pad), jnp.float32).at[:, :num_classes].set(w2.astype(jnp.float32))
    b2p = jnp.zeros((1, nc_pad), jnp.float32).at[:, :num_classes].set(
        b2.astype(jnp.float32).reshape(1, num_classes))

    itemsize = jnp.dtype(x.dtype).itemsize
    weight_bytes = (C * HID + HID + HID * nc_pad + nc_pad) * 4
    cost = pl.CostEstimate(
        flops=B * C * S + 2 * B * C * HID + 2 * B * HID * nc_pad,
        transcendentals=0,
        bytes_accessed=B * C * S * itemsize + weight_bytes + B * nc_pad * 4,
    )

    weight_specs = [
        pl.BlockSpec((C, HID), lambda *_: (0, 0)),        # w1 (BN folded), resident
        pl.BlockSpec((1, HID), lambda *_: (0, 0)),        # b1 (BN folded)
        pl.BlockSpec((HID, nc_pad), lambda *_: (0, 0)),   # w2 (lane-padded)
        pl.BlockSpec((1, nc_pad), lambda *_: (0, 0)),     # b2 (lane-padded)
    ]
    out_shape = jax.ShapeDtypeStruct((B, nc_pad), jnp.float32)
    compiler_params = pltpu.CompilerParams(
        dimension_semantics=("arbitrary",),
        vmem_limit_bytes=32 * 1024 * 1024,
    )

    # Single-shot fast path: whole (B, C, S) feature map (double-buffered) fits VMEM.
    single_shot = ts is None and 2 * B * C * S * itemsize <= 12 * 1024 * 1024
    if single_shot:
        out = pl.pallas_call(
            functools.partial(_ibc_single_kernel, inv_s=1.0 / float(S)),
            out_shape=out_shape,
            grid_spec=pltpu.PrefetchScalarGridSpec(
                num_scalar_prefetch=0,
                grid=(1,),
                in_specs=[pl.BlockSpec((B, C, S), lambda i: (0, 0, 0))] + weight_specs,
                out_specs=pl.BlockSpec((B, nc_pad), lambda i: (0, 0)),
            ),
            compiler_params=compiler_params,
            cost_estimate=cost,
        )(x, w1f, b1f, w2p, b2p)
    else:
        # Streamed spatial reduction: (B, C, ts) tiles with ts lanes (multiple of
        # 128); the ragged last tile is masked in-kernel. ts is sized so 2 input
        # buffers + the f32 tile-shaped accumulator stay inside the VMEM budget on
        # every generation (including v7x's 64 MiB parts).
        if ts is None:
            budget = 16 * 1024 * 1024
            per_lane = (2 * itemsize + 4) * B * C
            ts = max(LANE, min(1024, (budget // per_lane) // LANE * LANE))
        assert ts % LANE == 0, ts
        n_s = pl.cdiv(S, ts)

        kernel = functools.partial(
            _ibc_stream_kernel, inv_s=1.0 / float(S), s_total=S, ts=ts)

        out = pl.pallas_call(
            kernel,
            out_shape=out_shape,
            grid_spec=pltpu.PrefetchScalarGridSpec(
                num_scalar_prefetch=0,
                grid=(n_s,),
                in_specs=[pl.BlockSpec((B, C, ts), lambda s: (0, 0, s))] + weight_specs,
                out_specs=pl.BlockSpec((B, nc_pad), lambda s: (0, 0)),
                scratch_shapes=[pltpu.VMEM((B, C, ts), jnp.float32)],
            ),
            compiler_params=compiler_params,
            cost_estimate=cost,
        )(x, w1f, b1f, w2p, b2p)

    return out[:, :num_classes]


def reference_forward(feat_ncdhw, params):
    w1, b1, gamma, beta, rm, rv, w2, b2 = params
    B, C = feat_ncdhw.shape[:2]
    pooled = feat_ncdhw.reshape(B, C, -1).astype(jnp.float32).mean(axis=-1)
    h = pooled @ w1 + b1
    h = (h - rm) / jnp.sqrt(rv + 1e-5) * gamma + beta
    h = jnp.maximum(h, 0.0)
    return h @ w2 + b2


if __name__ == "__main__":
    # Small, deterministic shapes consistent with the module's forward.
    B = 2
    num_features = 32      # channel dim of the backbone's last feature map
    num_classes = 4

    key = jax.random.PRNGKey(0)
    ks = jax.random.split(key, 7)

    # Deterministic parameters (weights stored as (in, out) so the kernel does x @ W).
    w1 = jax.random.normal(ks[1], (num_features, HID), dtype=jnp.float32) * 0.05
    b1 = jax.random.normal(ks[2], (1, HID), dtype=jnp.float32) * 0.01
    gamma = jnp.full((1, HID), 1.1, dtype=jnp.float32)   # BatchNorm1d weight
    beta = jnp.full((1, HID), 0.05, dtype=jnp.float32)   # BatchNorm1d bias
    rm = jnp.full((1, HID), 0.02, dtype=jnp.float32)     # running_mean
    rv = jnp.full((1, HID), 0.90, dtype=jnp.float32)     # running_var
    w2 = jax.random.normal(ks[3], (HID, num_classes), dtype=jnp.float32) * 0.05
    b2 = jax.random.normal(ks[4], (1, num_classes), dtype=jnp.float32) * 0.01
    params = (w1, b1, gamma, beta, rm, rv, w2, b2)

    # 1) Single-shot fast path (whole feature map resident in VMEM), f32, S = 64.
    feat = jax.random.normal(ks[0], (B, num_features, 4, 4, 4), dtype=jnp.float32)
    out = jax.block_until_ready(ibc_forward(feat, params))
    ref = reference_forward(feat, params)
    assert out.shape == (B, num_classes), out.shape
    assert jnp.allclose(out, ref, atol=1e-4, rtol=1e-4), (out, ref)

    # 2) Streamed path with ragged last tile: S = 216, ts = 128 -> 2 reduction
    #    steps with 40 masked lanes on the final tile.
    feat2 = jax.random.normal(ks[5], (B, num_features, 6, 6, 6), dtype=jnp.float32)
    out2 = jax.block_until_ready(ibc_forward(feat2, params, ts=128))
    ref2 = reference_forward(feat2, params)
    assert jnp.allclose(out2, ref2, atol=1e-4, rtol=1e-4), (out2, ref2)

    # 3) Streamed path with a bf16 backbone feature map (cast to f32 at load).
    feat3 = feat2.astype(jnp.bfloat16)
    out3 = jax.block_until_ready(ibc_forward(feat3, params, ts=128))
    ref3 = reference_forward(feat3, params)
    assert jnp.allclose(out3, ref3, atol=2e-3, rtol=2e-3), (out3, ref3)

    print("KERNEL_OK")
</pallas_src>

<mosaic_0001>
module attributes {stable_mosaic.version = 11 : i64} {
  func.func @_ibc_single_kernel(%arg0: i32, %arg1: memref<2x32x64xf32, #tpu.memory_space<vmem>>, %arg2: memref<32x256xf32, #tpu.memory_space<vmem>>, %arg3: memref<1x256xf32, #tpu.memory_space<vmem>>, %arg4: memref<256x128xf32, #tpu.memory_space<vmem>>, %arg5: memref<1x128xf32, #tpu.memory_space<vmem>>, %arg6: memref<2x128xf32, #tpu.memory_space<vmem>>) attributes {dimension_semantics = [#tpu.dimension_semantics<arbitrary>], iteration_bounds = array<i64: 1>, scalar_prefetch = 0 : i64, scratch_operands = 0 : i64, tpu.core_type = #tpu.core_type<tc>, window_params = [{pipeline_mode = #tpu.pipeline_mode<synchronous>, transform_indices = @transform_0, window_bounds = array<i64: 2, 32, 64>}, {pipeline_mode = #tpu.pipeline_mode<synchronous>, transform_indices = @transform_1, window_bounds = array<i64: 32, 256>}, {pipeline_mode = #tpu.pipeline_mode<synchronous>, transform_indices = @transform_2, window_bounds = array<i64: 1, 256>}, {pipeline_mode = #tpu.pipeline_mode<synchronous>, transform_indices = @transform_3, window_bounds = array<i64: 256, 128>}, {pipeline_mode = #tpu.pipeline_mode<synchronous>, transform_indices = @transform_4, window_bounds = array<i64: 1, 128>}, {pipeline_mode = #tpu.pipeline_mode<synchronous>, transform_indices = @transform_5, window_bounds = array<i64: 2, 128>}]} {
    %c0 = arith.constant 0 : index
    %c0_0 = arith.constant 0 : index
    %c0_1 = arith.constant 0 : index
    %0 = vector.load %arg1[%c0, %c0_0, %c0_1] : memref<2x32x64xf32, #tpu.memory_space<vmem>>, vector<2x32x64xf32>
    %cst = arith.constant dense<0.000000e+00> : vector<2x32xf32>
    %1 = vector.multi_reduction <add>, %0, %cst [2] : vector<2x32x64xf32> to vector<2x32xf32>
    %cst_2 = arith.constant 1.562500e-02 : f32
    %2 = vector.broadcast %cst_2 : f32 to vector<2x32xf32>
    %3 = arith.mulf %1, %2 : vector<2x32xf32>
    %c0_3 = arith.constant 0 : index
    %c0_4 = arith.constant 0 : index
    %4 = vector.load %arg2[%c0_3, %c0_4] : memref<32x256xf32, #tpu.memory_space<vmem>>, vector<32x256xf32>
    %cst_5 = arith.constant dense<0.000000e+00> : vector<2x256xf32>
    %5 = tpu.matmul %3, %4, %cst_5 {dimension_numbers = #tpu.dot_dimension_numbers<[1], [0], [0], [1], [0, 0, 1, 1], [], []>} : vector<2x32xf32>, vector<32x256xf32>, vector<2x256xf32> -> vector<2x256xf32>
    %c0_6 = arith.constant 0 : index
    %c0_7 = arith.constant 0 : index
    %6 = vector.load %arg3[%c0_6, %c0_7] : memref<1x256xf32, #tpu.memory_space<vmem>>, vector<1x256xf32>
    %7 = vector.broadcast %6 : vector<1x256xf32> to vector<2x256xf32>
    %8 = arith.addf %5, %7 : vector<2x256xf32>
    %cst_8 = arith.constant 0.000000e+00 : f32
    %9 = vector.broadcast %cst_8 : f32 to vector<2x256xf32>
    %10 = arith.maximumf %8, %9 : vector<2x256xf32>
    %c0_9 = arith.constant 0 : index
    %c0_10 = arith.constant 0 : index
    %11 = vector.load %arg4[%c0_9, %c0_10] : memref<256x128xf32, #tpu.memory_space<vmem>>, vector<256x128xf32>
    %cst_11 = arith.constant dense<0.000000e+00> : vector<2x128xf32>
    %12 = tpu.matmul %10, %11, %cst_11 {dimension_numbers = #tpu.dot_dimension_numbers<[1], [0], [0], [1], [0, 0, 1, 1], [], []>} : vector<2x256xf32>, vector<256x128xf32>, vector<2x128xf32> -> vector<2x128xf32>
    %c0_12 = arith.constant 0 : index
    %c0_13 = arith.constant 0 : index
    %13 = vector.load %arg5[%c0_12, %c0_13] : memref<1x128xf32, #tpu.memory_space<vmem>>, vector<1x128xf32>
    %14 = vector.broadcast %13 : vector<1x128xf32> to vector<2x128xf32>
    %15 = arith.addf %12, %14 : vector<2x128xf32>
    %c0_14 = arith.constant 0 : index
    %c0_15 = arith.constant 0 : index
    %16 = vector.load %arg6[%c0_14, %c0_15] : memref<2x128xf32, #tpu.memory_space<vmem>>, vector<2x128xf32>
    tpu.vector_store %arg6[%c0_14, %c0_15], %15 {strides = array<i32>} : memref<2x128xf32, #tpu.memory_space<vmem>>, vector<2x128xf32>,
    return
  }
  func.func @transform_0(%arg0: i32) -> (i32, i32, i32) {
    %c0_i32 = arith.constant 0 : i32
    %c0_i32_0 = arith.constant 0 : i32
    %c0_i32_1 = arith.constant 0 : i32
    %c0_i32_2 = arith.constant 0 : i32
    return %c0_i32, %c0_i32_0, %c0_i32_1 : i32, i32, i32
  }
  func.func @transform_1(%arg0: i32) -> (i32, i32) {
    %c0_i32 = arith.constant 0 : i32
    %c0_i32_0 = arith.constant 0 : i32
    %c0_i32_1 = arith.constant 0 : i32
    return %c0_i32, %c0_i32_0 : i32, i32
  }
  func.func @transform_2(%arg0: i32) -> (i32, i32) {
    %c0_i32 = arith.constant 0 : i32
    %c0_i32_0 = arith.constant 0 : i32
    %c0_i32_1 = arith.constant 0 : i32
    return %c0_i32, %c0_i32_0 : i32, i32
  }
  func.func @transform_3(%arg0: i32) -> (i32, i32) {
    %c0_i32 = arith.constant 0 : i32
    %c0_i32_0 = arith.constant 0 : i32
    %c0_i32_1 = arith.constant 0 : i32
    return %c0_i32, %c0_i32_0 : i32, i32
  }
  func.func @transform_4(%arg0: i32) -> (i32, i32) {
    %c0_i32 = arith.constant 0 : i32
    %c0_i32_0 = arith.constant 0 : i32
    %c0_i32_1 = arith.constant 0 : i32
    return %c0_i32, %c0_i32_0 : i32, i32
  }
  func.func @transform_5(%arg0: i32) -> (i32, i32) {
    %c0_i32 = arith.constant 0 : i32
    %c0_i32_0 = arith.constant 0 : i32
    %c0_i32_1 = arith.constant 0 : i32
    return %c0_i32, %c0_i32_0 : i32, i32
  }
}

</mosaic_0001>

<llo_original>
// kernel: tpu_custom_call.1
$region0: #{tpu_custom_call.1}
  #allocation0 [shape = 'u32[]', space=smem, size = 0x4, offset = 0x4, fixed_abs, tag = 'smem constant byte address 0x4 - core index']
  #allocation1 [shape = 'u32[144,128]{1,0:T(1,128)}', space=vmem, size = 0x12000, scoped, tag = 'internal scratch']
  %s0 = inlined_call_operand.hbm [shape: f32[2,32,64], index: 0, kind: input, shape index: {}]
  %s1 = inlined_call_operand.hbm [shape: f32[32,256], index: 1, kind: input, shape index: {}]
  %s2 = inlined_call_operand.vmem [shape: f32[1,256], index: 2, kind: input, shape index: {}]
  %s3 = inlined_call_operand.hbm [shape: f32[256,128], index: 3, kind: input, shape index: {}]
  %s4 = inlined_call_operand.vmem [shape: f32[1,128], index: 4, kind: input, shape index: {}]
  %s5 = inlined_call_operand.hbm [shape: f32[2,128], index: 5, kind: output, shape index: {}]
  %s6 = sld [smem:[#allocation0]]
  $region42: #{tpu_custom_call.1} parent=0
    _
  %s8 = ssub.s32 1, %s6
  %s9 = scalar_select 0, %s8, %s6
  $region1: #{tpu_custom_call.1} parent=0
    #allocation2 [shape = 'u8[32768]{0}', space=vmem, size = 0x8000, scoped, tag = 'input window, operand 0, single buffered']
    #allocation3 [shape = 's32[1]{0}', space=sflag, size = 0x4, scoped, tag = 'scoped memory for tpu_custom_call.1']
    #allocation4 [shape = 's32[1]{0}', space=sflag, size = 0x4, scoped, tag = 'scoped memory for tpu_custom_call.1']
    #allocation5 [shape = 'u8[32768]{0}', space=vmem, size = 0x8000, scoped, tag = 'input window, operand 1, single buffered']
    #allocation6 [shape = 's32[1]{0}', space=sflag, size = 0x4, scoped, tag = 'scoped memory for tpu_custom_call.1']
    #allocation7 [shape = 'u8[131072]{0}', space=vmem, size = 0x20000, scoped, tag = 'input window, operand 3, single buffered']
    #allocation8 [shape = 'u8[1024]{0}', space=vmem, size = 0x400, scoped, tag = 'output window, operand 0, single buffered']
    %10 = vsyncpa [#allocation3], 0
    %11 = vsyncpa [#allocation6], 0
    %12 = vsyncpa [#allocation4], 0
    // Predicated region
    $region2: #{tpu_custom_call.1} parent=1 // pred_check
      _
    $region3: #{tpu_custom_call.1} parent=1 // pred_check_branch
      %14 = sbr.rel (0) target = $region5
    $region4: #{tpu_custom_call.1} parent=1 // pred_region
      %s16 = ssub.s32 1024, 1024
      %17 = vsyncadd [#allocation3], %s16
      %s18 = sshll.u32 [#allocation2], 4
      %s19 = int_to_ptr.vmem [resolvable:$true] %s18
      %24 = dma.hbm_to_vmem [thread:$0]  %s0, 1024, %s19, [#allocation3], 128, 128, 8
    $region5: #{tpu_custom_call.1} parent=1 // pred_fallthru
      _
    // Predicated region
    $region6: #{tpu_custom_call.1} parent=1 // pred_check
      _
    $region7: #{tpu_custom_call.1} parent=1 // pred_check_branch
      %26 = sbr.rel (0) target = $region9
    $region8: #{tpu_custom_call.1} parent=1 // pred_region
      %s28 = ssub.s32 1024, 1024
      %29 = vsyncadd [#allocation6], %s28
      %s30 = sshll.u32 [#allocation5], 4
      %s31 = int_to_ptr.vmem [resolvable:$true] %s30
      %36 = dma.hbm_to_vmem [thread:$0]  %s1, 1024, %s31, [#allocation6], 256, 256, 16
    $region9: #{tpu_custom_call.1} parent=1 // pred_fallthru
      _
    // Predicated region
    $region10: #{tpu_custom_call.1} parent=1 // pred_check
      _
    $region11: #{tpu_custom_call.1} parent=1 // pred_check_branch
      %38 = sbr.rel (0) target = $region13
    $region12: #{tpu_custom_call.1} parent=1 // pred_region
      _
    $region13: #{tpu_custom_call.1} parent=1 // pred_fallthru
      _
    // Predicated region
    $region14: #{tpu_custom_call.1} parent=1 // pred_check
      _
    $region15: #{tpu_custom_call.1} parent=1 // pred_check_branch
      %40 = sbr.rel (0) target = $region17
    $region16: #{tpu_custom_call.1} parent=1 // pred_region
      %s42 = ssub.s32 4096, 4096
      %43 = vsyncadd [#allocation6], %s42
      %s44 = sshll.u32 [#allocation7], 4
      %s45 = int_to_ptr.vmem [resolvable:$true] %s44
      %50 = dma.hbm_to_vmem [thread:$0]  %s3, 4096, %s45, [#allocation6], 128, 128, 8
    $region17: #{tpu_custom_call.1} parent=1 // pred_fallthru
      _
    // Predicated region
    $region18: #{tpu_custom_call.1} parent=1 // pred_check
      _
    $region19: #{tpu_custom_call.1} parent=1 // pred_check_branch
      %52 = sbr.rel (0) target = $region21
    $region20: #{tpu_custom_call.1} parent=1 // pred_region
      _
    $region21: #{tpu_custom_call.1} parent=1 // pred_fallthru
      _
    // Predicated region
    $region22: #{tpu_custom_call.1} parent=1 // pred_check
      _
    $region23: #{tpu_custom_call.1} parent=1 // pred_check_branch
      %54 = sbr.rel (0) target = $region25
    $region24: #{tpu_custom_call.1} parent=1 // pred_region
      %55 = dma.done [#allocation3], 1024
    $region25: #{tpu_custom_call.1} parent=1 // pred_fallthru
      _
    // Predicated region
    $region26: #{tpu_custom_call.1} parent=1 // pred_check
      _
    $region27: #{tpu_custom_call.1} parent=1 // pred_check_branch
      %57 = sbr.rel (0) target = $region29
    $region28: #{tpu_custom_call.1} parent=1 // pred_region
      %58 = dma.done [#allocation6], 1024
    $region29: #{tpu_custom_call.1} parent=1 // pred_fallthru
      _
    // Predicated region
    $region30: #{tpu_custom_call.1} parent=1 // pred_check
      _
    $region31: #{tpu_custom_call.1} parent=1 // pred_check_branch
      %60 = sbr.rel (0) target = $region33
    $region32: #{tpu_custom_call.1} parent=1 // pred_region
      %61 = dma.done [#allocation6], 4096
    $region33: #{tpu_custom_call.1} parent=1 // pred_fallthru
      _
    %v62 = vld [vmem:[#allocation2] sm:$0xff]
    %v63 = vld [vmem:[#allocation2 + $0x8] sm:$0xff]
    %v64 = vld [vmem:[#allocation2 + $0x10] sm:$0xff]
    %v65 = vld [vmem:[#allocation2 + $0x18] sm:$0xff]
    %v66 = vld [vmem:[#allocation2 + $0x20] sm:$0xff]
    %v67 = vld [vmem:[#allocation2 + $0x28] sm:$0xff]
    %v68 = vld [vmem:[#allocation2 + $0x30] sm:$0xff]
    %v69 = vld [vmem:[#allocation2 + $0x38] sm:$0xff]
    %vm70 = vcmask 523264
    %v71 = vsel %vm70, %v62, 0.0
    %72 = vadd.xlane.f32.xlu0 %v71
    %v73 = vpop.xlane.xlu0 %72
    %v74 = vsel %vm70, %v63, 0.0
    %75 = vadd.xlane.f32.xlu0 %v74
    %v76 = vpop.xlane.xlu0 %75
    %v77 = vsel %vm70, %v64, 0.0
    %78 = vadd.xlane.f32.xlu0 %v77
    %v79 = vpop.xlane.xlu0 %78
    %v80 = vsel %vm70, %v65, 0.0
    %81 = vadd.xlane.f32.xlu0 %v80
    %v82 = vpop.xlane.xlu0 %81
    %v83 = vsel %vm70, %v66, 0.0
    %84 = vadd.xlane.f32.xlu0 %v83
    %v85 = vpop.xlane.xlu0 %84
    %v86 = vsel %vm70, %v67, 0.0
    %87 = vadd.xlane.f32.xlu0 %v86
    %v88 = vpop.xlane.xlu0 %87
    %v89 = vsel %vm70, %v68, 0.0
    %90 = vadd.xlane.f32.xlu0 %v89
    %v91 = vpop.xlane.xlu0 %90
    %v92 = vsel %vm70, %v69, 0.0
    %93 = vadd.xlane.f32.xlu0 %v92
    %v94 = vpop.xlane.xlu0 %93
    %v95 = vmul.f32 %v73, 0.015625
    %v96 = vmul.f32 %v76, 0.015625
    %v97 = vmul.f32 %v79, 0.015625
    %v98 = vmul.f32 %v82, 0.015625
    %v99 = vmul.f32 %v85, 0.015625
    %v100 = vmul.f32 %v88, 0.015625
    %v101 = vmul.f32 %v91, 0.015625
    %v102 = vmul.f32 %v94, 0.015625
    %v103 = vld [vmem:[#allocation5] sm:$0xff]
    %v104 = vld [vmem:[#allocation5 + $0x8] sm:$0xff]
    %v105 = vld [vmem:[#allocation5 + $0x10] sm:$0xff]
    %v106 = vld [vmem:[#allocation5 + $0x18] sm:$0xff]
    %v107 = vld [vmem:[#allocation5 + $0x20] sm:$0xff]
    %v108 = vld [vmem:[#allocation5 + $0x28] sm:$0xff]
    %v109 = vld [vmem:[#allocation5 + $0x30] sm:$0xff]
    %v110 = vld [vmem:[#allocation5 + $0x38] sm:$0xff]
    %v111 = vld [vmem:[%s2] sm:$0x3]
    %v113 = vlaneseq
    %v114 = vshrl.u32 %v113, 7
    %v115 = vsub.s32 0, %v114
    %v116 = vrot.slane %v111, %v115
    %v117 = vlaneseq
    %v118 = vshrl.u32 %v117, 7
    %v119 = vsub.s32 1, %v118
    %v120 = vrot.slane %v111, %v119
    %v131 = vlaneseq
    %v132 = vand.u32 %v131, 127
    %v133 = vlaneseq
    %v134 = vshrl.u32 %v133, 7
    %v135 = vsub.s32 %v132, %v134
    %v136 = vrot.slane %v95, %v135
    %v137 = vadd.s32 %v132, 4294967288
    %v138 = vlaneseq
    %v139 = vshrl.u32 %v138, 7
    %v140 = vsub.s32 %v137, %v139
    %v141 = vrot.slane %v96, %v140
    %vm142 = vcmask 130112
    %v143 = vsel %vm142, %v141, %v136
    %v144 = vadd.s32 %v132, 4294967280
    %v145 = vlaneseq
    %v146 = vshrl.u32 %v145, 7
    %v147 = vsub.s32 %v144, %v146
    %v148 = vrot.slane %v97, %v147
    %vm149 = vcmask 195712
    %v150 = vsel %vm149, %v148, %v143
    %v151 = vadd.s32 %v132, 4294967272
    %v152 = vlaneseq
    %v153 = vshrl.u32 %v152, 7
    %v154 = vsub.s32 %v151, %v153
    %v155 = vrot.slane %v98, %v154
    %vm156 = vcmask 261312
    %v157 = vsel %vm156, %v155, %v150
    %v158 = vlaneseq
    %v159 = vshrl.u32 %v158, 7
    %v160 = vsub.s32 %v132, %v159
    %v161 = vrot.slane %v99, %v160
    %v162 = vlaneseq
    %v163 = vshrl.u32 %v162, 7
    %v164 = vsub.s32 %v137, %v163
    %v165 = vrot.slane %v100, %v164
    %v166 = vsel %vm142, %v165, %v161
    %v167 = vlaneseq
    %v168 = vshrl.u32 %v167, 7
    %v169 = vsub.s32 %v144, %v168
    %v170 = vrot.slane %v101, %v169
    %v171 = vsel %vm149, %v170, %v166
    %v172 = vlaneseq
    %v173 = vshrl.u32 %v172, 7
    %v174 = vsub.s32 %v151, %v173
    %v175 = vrot.slane %v102, %v174
    %v176 = vsel %vm156, %v175, %v171
    %vm177 = vcmask 1041409
    %v178 = vsel %vm177, %v176, %v157
    %vm179 = vcmask 261120
    %v180 = vsel %vm179, %v178, 0
    %182 = vmatprep.subr.mxu0 %v104
    %183 = vmatpush1.msra.mxu0 %v103
    %184 = vmatprep.subr.mxu0 %v106
    %185 = vmatpush1.msra.mxu0 %v105
    %186 = vmatprep.subr.mxu0 %v108
    %187 = vmatpush1.msra.mxu0 %v107
    %188 = vmatprep.subr.mxu0 %v110
    %189 = vmatpush1.msra.mxu0 %v109
    %190 = vmatprep.subr.mxu0 0.0
    %191 = vmatpush1.msra.mxu0 0.0
    %192 = vmatprep.subr.mxu0 0.0
    %193 = vmatpush1.msra.mxu0 0.0
    %194 = vmatprep.subr.mxu0 0.0
    %195 = vmatpush1.msra.mxu0 0.0
    %196 = vmatprep.subr.mxu0 0.0
    %197 = vmatpush1.msra.mxu0 0.0
    %198 = vmatprep.subr.mxu0 0.0
    %199 = vmatpush1.msra.mxu0 0.0
    %200 = vmatprep.subr.mxu0 0.0
    %201 = vmatpush1.msra.mxu0 0.0
    %202 = vmatprep.subr.mxu0 0.0
    %203 = vmatpush1.msra.mxu0 0.0
    %204 = vmatprep.subr.mxu0 0.0
    %205 = vmatpush1.msra.mxu0 0.0
    %206 = vmatprep.subr.mxu0 0.0
    %207 = vmatpush1.msra.mxu0 0.0
    %208 = vmatprep.subr.mxu0 0.0
    %209 = vmatpush1.msra.mxu0 0.0
    %210 = vmatprep.subr.mxu0 0.0
    %211 = vmatpush1.msra.mxu0 0.0
    %212 = vmatprep.subr.mxu0 0.0
    %213 = vmatpush1.msra.mxu0 0.0
    %214 = vmatprep.subr.mxu0 0.0
    %215 = vmatpush1.msra.mxu0 0.0
    %216 = vmatprep.subr.mxu0 0.0
    %217 = vmatpush1.msra.mxu0 0.0
    %218 = vmatprep.subr.mxu0 0.0
    %219 = vmatpush1.msra.mxu0 0.0
    %220 = vmatprep.subr.mxu0 0.0
    %221 = vmatpush1.msra.mxu0 0.0
    %222 = vmatprep.subr.mxu0 0.0
    %223 = vmatpush1.msra.mxu0 0.0
    %224 = vmatprep.subr.mxu0 0.0
    %225 = vmatpush1.msra.mxu0 0.0
    %226 = vmatprep.subr.mxu0 0.0
    %227 = vmatpush1.msra.mxu0 0.0
    %228 = vmatprep.subr.mxu0 0.0
    %229 = vmatpush1.msra.mxu0 0.0
    %230 = vmatprep.subr.mxu0 0.0
    %231 = vmatpush1.msra.mxu0 0.0
    %232 = vmatprep.subr.mxu0 0.0
    %233 = vmatpush1.msra.mxu0 0.0
    %234 = vmatprep.subr.mxu0 0.0
    %235 = vmatpush1.msra.mxu0 0.0
    %236 = vmatprep.subr.mxu0 0.0
    %237 = vmatpush1.msra.mxu0 0.0
    %238 = vmatprep.subr.mxu0 0.0
    %239 = vmatpush1.msra.mxu0 0.0
    %240 = vmatprep.subr.mxu0 0.0
    %241 = vmatpush1.msra.mxu0 0.0
    %242 = vmatprep.subr.mxu0 0.0
    %243 = vmatpush1.msra.mxu0 0.0
    %244 = vmatprep.subr.mxu0 0.0
    %245 = vmatpush1.msra.mxu0 0.0
    %246 = vmatprep.mubr.f32.mxu0 0.0
    %247 = vmatmul.mubr.f32.gmra.mrb[0].mxu0 %v180
    %v248 = vpop.f32.mrb[0].mxu0
    %v249 = vadd.f32 %v116, %v248
    %v250 = vpop.f32.mrb[0].mxu0
    %v251 = vadd.f32 %v120, %v250
    %252 = vdwg.mxu0
    %v253 = vmax.f32 %v249, 0.0
    %v254 = vmax.f32 %v251, 0.0
    %v255 = vld [vmem:[#allocation7] sm:$0xff]
    %v256 = vld [vmem:[#allocation7 + $0x8] sm:$0xff]
    %v257 = vld [vmem:[#allocation7 + $0x10] sm:$0xff]
    %v258 = vld [vmem:[#allocation7 + $0x18] sm:$0xff]
    %v259 = vld [vmem:[#allocation7 + $0x20] sm:$0xff]
    %v260 = vld [vmem:[#allocation7 + $0x28] sm:$0xff]
    %v261 = vld [vmem:[#allocation7 + $0x30] sm:$0xff]
    %v262 = vld [vmem:[#allocation7 + $0x38] sm:$0xff]
    %v263 = vld [vmem:[#allocation7 + $0x40] sm:$0xff]
    %v264 = vld [vmem:[#allocation7 + $0x48] sm:$0xff]
    %v265 = vld [vmem:[#allocation7 + $0x50] sm:$0xff]
    %v266 = vld [vmem:[#allocation7 + $0x58] sm:$0xff]
    %v267 = vld [vmem:[#allocation7 + $0x60] sm:$0xff]
    %v268 = vld [vmem:[#allocation7 + $0x68] sm:$0xff]
    %v269 = vld [vmem:[#allocation7 + $0x70] sm:$0xff]
    %v270 = vld [vmem:[#allocation7 + $0x78] sm:$0xff]
    %v271 = vld [vmem:[#allocation7 + $0x80] sm:$0xff]
    %v272 = vld [vmem:[#allocation7 + $0x88] sm:$0xff]
    %v273 = vld [vmem:[#allocation7 + $0x90] sm:$0xff]
    %v274 = vld [vmem:[#allocation7 + $0x98] sm:$0xff]
    %v275 = vld [vmem:[#allocation7 + $0xa0] sm:$0xff]
    %v276 = vld [vmem:[#allocation7 + $0xa8] sm:$0xff]
    %v277 = vld [vmem:[#allocation7 + $0xb0] sm:$0xff]
    %v278 = vld [vmem:[#allocation7 + $0xb8] sm:$0xff]
    %v279 = vld [vmem:[#allocation7 + $0xc0] sm:$0xff]
    %v280 = vld [vmem:[#allocation7 + $0xc8] sm:$0xff]
    %v281 = vld [vmem:[#allocation7 + $0xd0] sm:$0xff]
    %v282 = vld [vmem:[#allocation7 + $0xd8] sm:$0xff]
    %v283 = vld [vmem:[#allocation7 + $0xe0] sm:$0xff]
    %v284 = vld [vmem:[#allocation7 + $0xe8] sm:$0xff]
    %v285 = vld [vmem:[#allocation7 + $0xf0] sm:$0xff]
    %v286 = vld [vmem:[#allocation7 + $0xf8] sm:$0xff]
    %v287 = vld [vmem:[%s4] sm:$0x1]
    %v289 = vlaneseq
    %v290 = vshrl.u32 %v289, 7
    %v291 = vsub.s32 0, %v290
    %v292 = vrot.slane %v287, %v291
    %294 = vmatprep.subr.mxu0 0.0
    %295 = vmatpush1.msra.mxu0 %v255
    %296 = vmatprep.subr.mxu0 0.0
    %297 = vmatpush1.msra.mxu0 %v256
    %298 = vmatprep.subr.mxu0 0.0
    %299 = vmatpush1.msra.mxu0 %v257
    %300 = vmatprep.subr.mxu0 0.0
    %301 = vmatpush1.msra.mxu0 %v258
    %302 = vmatprep.subr.mxu0 0.0
    %303 = vmatpush1.msra.mxu0 %v259
    %304 = vmatprep.subr.mxu0 0.0
    %305 = vmatpush1.msra.mxu0 %v260
    %306 = vmatprep.subr.mxu0 0.0
    %307 = vmatpush1.msra.mxu0 %v261
    %308 = vmatprep.subr.mxu0 0.0
    %309 = vmatpush1.msra.mxu0 %v262
    %310 = vmatprep.subr.mxu0 0.0
    %311 = vmatpush1.msra.mxu0 %v263
    %312 = vmatprep.subr.mxu0 0.0
    %313 = vmatpush1.msra.mxu0 %v264
    %314 = vmatprep.subr.mxu0 0.0
    %315 = vmatpush1.msra.mxu0 %v265
    %316 = vmatprep.subr.mxu0 0.0
    %317 = vmatpush1.msra.mxu0 %v266
    %318 = vmatprep.subr.mxu0 0.0
    %319 = vmatpush1.msra.mxu0 %v267
    %320 = vmatprep.subr.mxu0 0.0
    %321 = vmatpush1.msra.mxu0 %v268
    %322 = vmatprep.subr.mxu0 0.0
    %323 = vmatpush1.msra.mxu0 %v269
    %324 = vmatprep.subr.mxu0 0.0
    %325 = vmatpush1.msra.mxu0 %v270
    %326 = vmatprep.subr.mxu0 0.0
    %327 = vmatpush1.msra.mxu0 %v271
    %328 = vmatprep.subr.mxu0 0.0
    %329 = vmatpush1.msra.mxu0 %v272
    %330 = vmatprep.subr.mxu0 0.0
    %331 = vmatpush1.msra.mxu0 %v273
    %332 = vmatprep.subr.mxu0 0.0
    %333 = vmatpush1.msra.mxu0 %v274
    %334 = vmatprep.subr.mxu0 0.0
    %335 = vmatpush1.msra.mxu0 %v275
    %336 = vmatprep.subr.mxu0 0.0
    %337 = vmatpush1.msra.mxu0 %v276
    %338 = vmatprep.subr.mxu0 0.0
    %339 = vmatpush1.msra.mxu0 %v277
    %340 = vmatprep.subr.mxu0 0.0
    %341 = vmatpush1.msra.mxu0 %v278
    %342 = vmatprep.subr.mxu0 0.0
    %343 = vmatpush1.msra.mxu0 %v279
    %344 = vmatprep.subr.mxu0 0.0
    %345 = vmatpush1.msra.mxu0 %v280
    %346 = vmatprep.subr.mxu0 0.0
    %347 = vmatpush1.msra.mxu0 %v281
    %348 = vmatprep.subr.mxu0 0.0
    %349 = vmatpush1.msra.mxu0 %v282
    %350 = vmatprep.subr.mxu0 0.0
    %351 = vmatpush1.msra.mxu0 %v283
    %352 = vmatprep.subr.mxu0 0.0
    %353 = vmatpush1.msra.mxu0 %v284
    %354 = vmatprep.subr.mxu0 0.0
    %355 = vmatpush1.msra.mxu0 %v285
    %356 = vmatprep.subr.mxu0 0.0
    %357 = vmatpush1.msra.mxu0 %v286
    %358 = vmatprep.mubr.f32.mxu0 %v254
    %359 = vmatmul.mubr.f32.gmra.mrb[0].mxu0 %v253
    %v360 = vpop.f32.mrb[0].mxu0
    %v361 = vadd.f32 %v292, %v360
    %v362 = vpop.f32.mrb[0].mxu0
    %363 = vdwg.mxu0
    %364 = vst [vmem:[#allocation8] sm:$0x3] %v361
    // Predicated region
    $region34: #{tpu_custom_call.1} parent=1 // pred_check
      _
    $region35: #{tpu_custom_call.1} parent=1 // pred_check_branch
      %366 = sbr.rel (0) target = $region37
    $region36: #{tpu_custom_call.1} parent=1 // pred_region
      %s368 = ssub.s32 32, 32
      %369 = vsyncadd [#allocation4], %s368
      %s371 = sshll.u32 [#allocation8], 4
      %s372 = int_to_ptr.vmem [resolvable:$true] %s371
      %374 = dma.vmem_to_hbm [thread:$0]  %s372, 32, %s5, [#allocation4]
    $region37: #{tpu_custom_call.1} parent=1 // pred_fallthru
      _
    // Predicated region
    $region38: #{tpu_custom_call.1} parent=1 // pred_check
      _
    $region39: #{tpu_custom_call.1} parent=1 // pred_check_branch
      %376 = sbr.rel (0) target = $region41
    $region40: #{tpu_custom_call.1} parent=1 // pred_region
      %377 = dma.done [#allocation4], 32
    $region41: #{tpu_custom_call.1} parent=1 // pred_fallthru
      _
    %378 = vsyncpa [#allocation3], 1
    %379 = vsyncpa [#allocation6], 1
    %380 = vsyncpa [#allocation4], 1

</llo_original>
